<compile_context>
chip_gen: v6e
topology: v6e:2x2x1
jax: 0.10.0
libtpu: 0.0.40
codegen_flags: <defaults>
</compile_context>

<pallas_src>
import functools
import math

import jax
import jax.numpy as jnp
from jax.experimental import pallas as pl
from jax.experimental.pallas import tpu as pltpu


def _ohem_ce_kernel(logits_ref, labels_ref, loss_ref, stats_ref, *,
                    thresh_val, ignore_lb, needs_mask, tail_valid):
    """One (image, pixel-block) grid step.

    logits_ref: (1, C, T, 128)  classes on the leading axis, pixels on a dense
                                (sublane, lane) tile.
    labels_ref: (1, T, 128)     int32 labels, fully lane+sublane dense.
    loss_ref:   (1, T, 128)     f32 per-pixel CE (reduction='none' semantics).
    stats_ref:  (1, 1, 2, 128)  per-block per-lane partial [sum; count] of
                                losses exceeding thresh.
    """
    x = logits_ref[0].astype(jnp.float32)            # (C, T, 128) f32 math
    lab = labels_ref[0]                              # (T, 128)

    # Numerically-stable CE: logsumexp over classes minus the picked logit.
    # The max-shift term cancels, so `picked` is taken from the shifted x.
    m = jnp.max(x, axis=0)                           # (T, 128)   (VPU only)
    xs = x - m[None]                                 # (C, T, 128)
    lse = jnp.log(jnp.sum(jnp.exp(xs), axis=0))      # (T, 128)
    cls = jax.lax.broadcasted_iota(jnp.int32, (x.shape[0], 1, 1), 0)
    picked = jnp.sum(jnp.where(cls == lab[None], xs, 0.0), axis=0)   # (T, 128)
    ce = lse - picked
    loss = jnp.where(lab == ignore_lb, 0.0, ce)      # ignore_index -> 0

    def finish(l):
        loss_ref[0] = l
        over = l > thresh_val
        psum = jnp.sum(jnp.where(over, l, 0.0), axis=0, keepdims=True)
        pcnt = jnp.sum(over.astype(jnp.float32), axis=0, keepdims=True)
        stats_ref[0, 0] = jnp.concatenate([psum, pcnt], axis=0)      # (2, 128)

    if not needs_mask:
        finish(loss)
    else:
        # Only the last pixel block of an image can contain padding; gate the
        # iota/compare/select so every other block skips it entirely.
        is_tail = pl.program_id(1) == pl.num_programs(1) - 1

        @pl.when(jnp.logical_not(is_tail))
        def _():
            finish(loss)

        @pl.when(is_tail)
        def _():
            t = loss.shape[0]
            pix = (jax.lax.broadcasted_iota(jnp.int32, (t, 128), 0) * 128
                   + jax.lax.broadcasted_iota(jnp.int32, (t, 128), 1))
            finish(jnp.where(pix < tail_valid, loss, -jnp.inf))


def _choose_rows(q, row_cap, n_images):
    """Pick rows-per-block (pixels = 128 * rows).

    Prefers a divisor of `q` (no padding), a multiple of 8 (sublane tiling) or
    the full extent, and enough blocks that the total grid has >= ~4 steps so
    both v7x TensorCores get work.  Returns (rows, q_padded).
    """
    row_cap = max(1, row_cap)
    nblk_min = -(-4 // max(1, n_images))             # ceil(4 / N)
    pref_cap = min(row_cap, q // nblk_min) if q >= nblk_min else 0
    for cap, allow_full in ((pref_cap, False), (min(q, row_cap), True)):
        for t in range(cap, 0, -1):
            if q % t == 0 and (t % 8 == 0 or (allow_full and t == q)):
                return t, q
    # No clean divisor: pad the pixel-row axis (rare; costs one logits copy).
    # TODO(synk): a BoundedSlice tail block would avoid this pad entirely.
    t = max(8, (min(q, row_cap) // 8) * 8)
    return t, -(-q // t) * t


def ohem_ce_loss(logits, labels, *, thresh, n_min, ignore_lb=255,
                 max_tile_pixels=32768, vmem_budget_bytes=12 << 20):
    """Matches OhemCELoss(thresh, n_min, ignore_lb).forward(logits, labels)."""
    N, C, H, W = logits.shape
    HW = H * W
    assert n_min <= N * HW, "n_min exceeds the number of pixels"
    thresh_val = float(-math.log(thresh))

    # --- pixel-tile selection (VMEM-budgeted, double-buffered) ------------
    # Per-row bytes: logits (native dtype) + int32 labels + f32 loss, x2 bufs.
    bytes_per_row = 2 * 128 * (C * logits.dtype.itemsize + 4 + 4)
    row_cap = max(8, min(vmem_budget_bytes // bytes_per_row,
                         max(1, max_tile_pixels // 128)))
    q0 = pl.cdiv(HW, 128)
    rows, q_pad = _choose_rows(q0, row_cap, N)
    HW_pad = q_pad * 128
    nblk = q_pad // rows
    needs_mask = HW_pad != HW

    # --- layout: (N, C, q, 128) logits / (N, q, 128) labels ---------------
    # Free reshapes of the contiguous HxW planes in the common (no-pad) case;
    # native dtype is kept so bf16 producers halve the dominant HBM read.
    if not needs_mask:
        x = logits.reshape(N, C, q_pad, 128)
        lab = labels.reshape(N, q_pad, 128).astype(jnp.int32)
    else:
        # Rare fallback: H*W has no 128-aligned factorisation that fits.
        x = jnp.pad(logits.reshape(N, C, HW),
                    ((0, 0), (0, 0), (0, HW_pad - HW))
                    ).reshape(N, C, q_pad, 128)
        lab = jnp.pad(labels.reshape(N, HW).astype(jnp.int32),
                      ((0, 0), (0, HW_pad - HW)),
                      constant_values=ignore_lb).reshape(N, q_pad, 128)

    kernel = functools.partial(
        _ohem_ce_kernel, thresh_val=thresh_val, ignore_lb=ignore_lb,
        needs_mask=needs_mask,
        tail_valid=HW - (nblk - 1) * rows * 128)

    itemsize = logits.dtype.itemsize
    cost = pl.CostEstimate(
        flops=8 * N * HW_pad * C,
        transcendentals=N * HW_pad * (C + 1),
        bytes_accessed=N * HW_pad * (C * itemsize + 4 + 4),
    )

    loss, stats = pl.pallas_call(
        kernel,
        out_shape=(jax.ShapeDtypeStruct((N, q_pad, 128), jnp.float32),
                   jax.ShapeDtypeStruct((N, nblk, 2, 128), jnp.float32)),
        grid_spec=pltpu.PrefetchScalarGridSpec(
            num_scalar_prefetch=0,
            grid=(N, nblk),
            in_specs=[
                pl.BlockSpec((1, C, rows, 128), lambda n, i: (n, 0, i, 0)),
                pl.BlockSpec((1, rows, 128), lambda n, i: (n, i, 0)),
            ],
            out_specs=[
                pl.BlockSpec((1, rows, 128), lambda n, i: (n, i, 0)),
                pl.BlockSpec((1, 1, 2, 128), lambda n, i: (n, i, 0, 0)),
            ],
        ),
        compiler_params=pltpu.CompilerParams(
            dimension_semantics=("parallel", "parallel"),
            vmem_limit_bytes=32 * 1024 * 1024),
        cost_estimate=cost,
    )(x, lab)

    # Tiny wrapper-side reduction over the per-block partials: no second full
    # HBM pass over the loss array.
    thr_sum = jnp.sum(stats[:, :, 0, :])
    thr_cnt = jnp.sum(stats[:, :, 1, :].astype(jnp.int32))

    def _mean_over_thresh():
        # thr_cnt > n_min >= 0 in this branch, so the division is safe.
        return thr_sum / thr_cnt.astype(jnp.float32)

    def _mean_top_nmin():
        # TODO(synk): torch.sort / boolean-mask selection has no Pallas TPU
        # primitive; top_k runs only when there are too few hard examples.
        return jnp.mean(jax.lax.top_k(loss.reshape(-1), n_min)[0])

    # sorted_desc(loss)[n_min] > thresh  <=>  count(loss > thresh) > n_min,
    # so the expensive top_k is skipped whenever enough pixels exceed thresh.
    return jax.lax.cond(thr_cnt > n_min, _mean_over_thresh, _mean_top_nmin)


def ohem_ce_loss_ref(logits, labels, *, thresh, n_min, ignore_lb=255):
    """Pure-JAX reference mirroring the PyTorch module."""
    N, C, H, W = logits.shape
    thresh_val = -math.log(thresh)
    x = jnp.transpose(logits, (0, 2, 3, 1)).reshape(-1, C).astype(jnp.float32)
    lab = labels.reshape(-1).astype(jnp.int32)
    lse = jax.scipy.special.logsumexp(x, axis=-1)
    picked = jnp.take_along_axis(
        x, jnp.clip(lab, 0, C - 1)[:, None], axis=-1)[:, 0]
    ce = jnp.where(lab == ignore_lb, 0.0, lse - picked)
    srt = jnp.sort(ce)[::-1]
    kth = srt[n_min]
    over = ce > thresh_val
    thr_mean = jnp.sum(jnp.where(over, ce, 0.0)) / jnp.sum(over)
    topn_mean = jnp.mean(srt[:n_min])
    return jnp.where(kth > thresh_val, thr_mean, topn_mean)


if __name__ == "__main__":
    key = jax.random.PRNGKey(0)
    k1, k2, k3 = jax.random.split(key, 3)

    N, C, H, W = 2, 8, 16, 16
    thresh = 0.7
    n_min = (N * H * W) // 16          # 32 hard examples minimum
    ignore_lb = 255

    logits = jax.random.normal(k1, (N, C, H, W), dtype=jnp.float32) * 2.0
    labels = jax.random.randint(k2, (N, H, W), 0, C, dtype=jnp.int32)
    # sprinkle in some ignored pixels
    ignore_mask = jax.random.uniform(k3, (N, H, W)) < 0.1
    labels = jnp.where(ignore_mask, ignore_lb, labels)

    out = ohem_ce_loss(logits, labels, thresh=thresh, n_min=n_min,
                       ignore_lb=ignore_lb)
    out = jax.block_until_ready(out)

    ref = jax.block_until_ready(
        ohem_ce_loss_ref(logits, labels, thresh=thresh, n_min=n_min,
                         ignore_lb=ignore_lb))

    assert jnp.isfinite(out), "non-finite loss"
    assert abs(float(out) - float(ref)) < 1e-4, (float(out), float(ref))
    print("KERNEL_OK")
</pallas_src>

<mosaic_0001>
module attributes {stable_mosaic.version = 11 : i64} {
  func.func @_ohem_ce_kernel(%arg0: i32, %arg1: i32, %arg2: memref<1x8x2x128xf32, #tpu.memory_space<vmem>>, %arg3: memref<1x2x128xi32, #tpu.memory_space<vmem>>, %arg4: memref<1x2x128xf32, #tpu.memory_space<vmem>>, %arg5: memref<1x1x2x128xf32, #tpu.memory_space<vmem>>) attributes {dimension_semantics = [#tpu.dimension_semantics<parallel>, #tpu.dimension_semantics<parallel>], iteration_bounds = array<i64: 2, 1>, scalar_prefetch = 0 : i64, scratch_operands = 0 : i64, tpu.core_type = #tpu.core_type<tc>, window_params = [{transform_indices = @transform_0, window_bounds = array<i64: 1, 8, 2, 128>}, {transform_indices = @transform_1, window_bounds = array<i64: 1, 2, 128>}, {transform_indices = @transform_2, window_bounds = array<i64: 1, 2, 128>}, {transform_indices = @transform_3, window_bounds = array<i64: 1, 1, 2, 128>}]} {
    %c0 = arith.constant 0 : index
    %c0_0 = arith.constant 0 : index
    %c0_1 = arith.constant 0 : index
    %c0_2 = arith.constant 0 : index
    %0 = vector.load %arg2[%c0, %c0_0, %c0_1, %c0_2] : memref<1x8x2x128xf32, #tpu.memory_space<vmem>>, vector<1x8x2x128xf32>
    %1 = vector.shape_cast %0 : vector<1x8x2x128xf32> to vector<8x2x128xf32>
    %c0_3 = arith.constant 0 : index
    %c0_4 = arith.constant 0 : index
    %c0_5 = arith.constant 0 : index
    %2 = vector.load %arg3[%c0_3, %c0_4, %c0_5] : memref<1x2x128xi32, #tpu.memory_space<vmem>>, vector<1x2x128xi32>
    %3 = vector.shape_cast %2 : vector<1x2x128xi32> to vector<2x128xi32>
    %cst = arith.constant dense<0xFF800000> : vector<2x128xf32>
    %4 = vector.multi_reduction <maximumf>, %1, %cst [0] : vector<8x2x128xf32> to vector<2x128xf32>
    %5 = vector.shape_cast %4 : vector<2x128xf32> to vector<1x2x128xf32>
    %6 = vector.broadcast %5 : vector<1x2x128xf32> to vector<8x2x128xf32>
    %7 = arith.subf %1, %6 : vector<8x2x128xf32>
    %8 = math.exp %7 : vector<8x2x128xf32>
    %cst_6 = arith.constant dense<0.000000e+00> : vector<2x128xf32>
    %9 = vector.multi_reduction <add>, %8, %cst_6 [0] : vector<8x2x128xf32> to vector<2x128xf32>
    %10 = math.log %9 : vector<2x128xf32>
    %11 = tpu.iota {dimensions = array<i32: 0>} : vector<8x1x1xi32>
    %12 = vector.shape_cast %3 : vector<2x128xi32> to vector<1x2x128xi32>
    %13 = vector.broadcast %11 : vector<8x1x1xi32> to vector<8x2x128xi32>
    %14 = vector.broadcast %12 : vector<1x2x128xi32> to vector<8x2x128xi32>
    %15 = arith.cmpi eq, %13, %14 : vector<8x2x128xi32>
    %cst_7 = arith.constant 0.000000e+00 : f32
    %16 = vector.broadcast %cst_7 : f32 to vector<8x2x128xf32>
    %17 = arith.select %15, %7, %16 : vector<8x2x128xi1>, vector<8x2x128xf32>
    %cst_8 = arith.constant dense<0.000000e+00> : vector<2x128xf32>
    %18 = vector.multi_reduction <add>, %17, %cst_8 [0] : vector<8x2x128xf32> to vector<2x128xf32>
    %19 = arith.subf %10, %18 : vector<2x128xf32>
    %c255_i32 = arith.constant 255 : i32
    %20 = vector.broadcast %c255_i32 : i32 to vector<2x128xi32>
    %21 = arith.cmpi eq, %3, %20 : vector<2x128xi32>
    %cst_9 = arith.constant 0.000000e+00 : f32
    %22 = vector.broadcast %cst_9 : f32 to vector<2x128xf32>
    %23 = arith.select %21, %22, %19 : vector<2x128xi1>, vector<2x128xf32>
    %c0_10 = arith.constant 0 : index
    %c0_11 = arith.constant 0 : index
    %c0_12 = arith.constant 0 : index
    %24 = vector.load %arg4[%c0_10, %c0_11, %c0_12] : memref<1x2x128xf32, #tpu.memory_space<vmem>>, vector<1x2x128xf32>
    %25 = vector.shape_cast %24 : vector<1x2x128xf32> to vector<2x128xf32>
    %26 = vector.shape_cast %23 : vector<2x128xf32> to vector<1x2x128xf32>
    tpu.vector_store %arg4[%c0_10, %c0_11, %c0_12], %26 {strides = array<i32>} : memref<1x2x128xf32, #tpu.memory_space<vmem>>, vector<1x2x128xf32>,
    %cst_13 = arith.constant 0.356674939 : f32
    %27 = vector.broadcast %cst_13 : f32 to vector<2x128xf32>
    %28 = arith.cmpf ogt, %23, %27 : vector<2x128xf32>
    %cst_14 = arith.constant 0.000000e+00 : f32
    %29 = vector.broadcast %cst_14 : f32 to vector<2x128xf32>
    %30 = arith.select %28, %23, %29 : vector<2x128xi1>, vector<2x128xf32>
    %cst_15 = arith.constant dense<0.000000e+00> : vector<128xf32>
    %31 = vector.multi_reduction <add>, %30, %cst_15 [0] : vector<2x128xf32> to vector<128xf32>
    %32 = vector.shape_cast %31 : vector<128xf32> to vector<1x128xf32>
    %33 = arith.extui %28 : vector<2x128xi1> to vector<2x128xi32>
    %34 = arith.sitofp %33 : vector<2x128xi32> to vector<2x128xf32>
    %cst_16 = arith.constant dense<0.000000e+00> : vector<128xf32>
    %35 = vector.multi_reduction <add>, %34, %cst_16 [0] : vector<2x128xf32> to vector<128xf32>
    %36 = vector.shape_cast %35 : vector<128xf32> to vector<1x128xf32>
    %37 = tpu.concatenate %32, %36 in 0 : vector<1x128xf32>, vector<1x128xf32> -> vector<2x128xf32>
    %c0_17 = arith.constant 0 : index
    %c0_18 = arith.constant 0 : index
    %c0_19 = arith.constant 0 : index
    %c0_20 = arith.constant 0 : index
    %38 = vector.load %arg5[%c0_17, %c0_18, %c0_19, %c0_20] : memref<1x1x2x128xf32, #tpu.memory_space<vmem>>, vector<1x1x2x128xf32>
    %39 = vector.shape_cast %38 : vector<1x1x2x128xf32> to vector<2x128xf32>
    %40 = vector.shape_cast %37 : vector<2x128xf32> to vector<1x1x2x128xf32>
    tpu.vector_store %arg5[%c0_17, %c0_18, %c0_19, %c0_20], %40 {strides = array<i32>} : memref<1x1x2x128xf32, #tpu.memory_space<vmem>>, vector<1x1x2x128xf32>,
    return
  }
  func.func @transform_0(%arg0: i32, %arg1: i32) -> (i32, i32, i32, i32) {
    %c0_i32 = arith.constant 0 : i32
    %c0_i32_0 = arith.constant 0 : i32
    %c0_i32_1 = arith.constant 0 : i32
    return %arg0, %c0_i32, %arg1, %c0_i32_0 : i32, i32, i32, i32
  }
  func.func @transform_1(%arg0: i32, %arg1: i32) -> (i32, i32, i32) {
    %c0_i32 = arith.constant 0 : i32
    %c0_i32_0 = arith.constant 0 : i32
    return %arg0, %arg1, %c0_i32 : i32, i32, i32
  }
  func.func @transform_2(%arg0: i32, %arg1: i32) -> (i32, i32, i32) {
    %c0_i32 = arith.constant 0 : i32
    %c0_i32_0 = arith.constant 0 : i32
    return %arg0, %arg1, %c0_i32 : i32, i32, i32
  }
  func.func @transform_3(%arg0: i32, %arg1: i32) -> (i32, i32, i32, i32) {
    %c0_i32 = arith.constant 0 : i32
    %c0_i32_0 = arith.constant 0 : i32
    %c0_i32_1 = arith.constant 0 : i32
    return %arg0, %arg1, %c0_i32, %c0_i32_0 : i32, i32, i32, i32
  }
}

</mosaic_0001>

<llo_original>
// kernel: tpu_custom_call.1
$region0: #{tpu_custom_call.1}
  #allocation0 [shape = 'u32[]', space=smem, size = 0x4, offset = 0x4, fixed_abs, tag = 'smem constant byte address 0x4 - core index']
  #allocation1 [shape = 'u32[144,128]{1,0:T(1,128)}', space=vmem, size = 0x12000, scoped, tag = 'internal scratch']
  %s0 = inlined_call_operand.hbm [shape: f32[2,8,2,128], index: 0, kind: input, shape index: {}]
  %s1 = inlined_call_operand.hbm [shape: s32[2,2,128], index: 1, kind: input, shape index: {}]
  %s2 = inlined_call_operand.hbm [shape: f32[2,2,128], index: 2, kind: output, shape index: {0}]
  %s3 = inlined_call_operand.hbm [shape: f32[2,1,2,128], index: 3, kind: output, shape index: {1}]
  %4 = xla_tuple %s2, %s3
  %s5 = sld [smem:[#allocation0]]
  $region57: #{tpu_custom_call.1} parent=0
    _
  %s7 = ssub.s32 1, %s5
  %s8 = scalar_select 0, %s7, %s5
  $region1: #{tpu_custom_call.1} parent=0
    #allocation2 [shape = 'u8[16384]{0}', space=vmem, size = 0x4000, scoped, tag = 'input window, operand 0']
    #allocation3 [shape = 's32[2]{0}', space=sflag, size = 0x8, scoped, tag = 'scoped memory for tpu_custom_call.1']
    #allocation4 [shape = 's32[2]{0}', space=sflag, size = 0x8, scoped, tag = 'scoped memory for tpu_custom_call.1']
    #allocation5 [shape = 'u8[2048]{0}', space=vmem, size = 0x800, scoped, tag = 'input window, operand 1']
    #allocation6 [shape = 's32[2]{0}', space=sflag, size = 0x8, scoped, tag = 'scoped memory for tpu_custom_call.1']
    #allocation7 [shape = 'u8[2048]{0}', space=vmem, size = 0x800, scoped, tag = 'output window, operand 0']
    #allocation8 [shape = 'u8[2048]{0}', space=vmem, size = 0x800, scoped, tag = 'output window, operand 1']
    #allocation9 [shape = 's32[2]{0}', space=sflag, size = 0x8, scoped, tag = 'scoped memory for tpu_custom_call.1']
    %9 = vsyncpa [#allocation3], 0
    %s10 = scalar_lea.sflag [#allocation3], 1
    %11 = vsyncpa %s10, 0
    %12 = vsyncpa [#allocation6], 0
    %s13 = scalar_lea.sflag [#allocation6], 1
    %14 = vsyncpa %s13, 0
    %15 = vsyncpa [#allocation4], 0
    %s16 = scalar_lea.sflag [#allocation4], 1
    %17 = vsyncpa %s16, 0
    %18 = vsyncpa [#allocation9], 0
    %s19 = scalar_lea.sflag [#allocation9], 1
    %20 = vsyncpa %s19, 0
    loop: start=0, step=1, limit=4
    $region2: #{tpu_custom_call.1} parent=1 // loop_pre_header
      _
    $region3: #{tpu_custom_call.1} parent=1 // loop_header
      %s22 = sphi 0, %s26
      %p23 = scmp.ge.s32.totalorder %s22, 4
      %s29 = sphi 0, %s41
      %s30 = sphi 0, %s37
      %s31 = sphi 0, %s29
      %s32 = sphi 0, %s30
      %s33 = sphi 0, %s31
      %s34 = sphi 0, %s32
      %s46 = sphi 0, %s48
      %s49 = sphi 0, %s46
      %s50 = sphi 0, %s49
      %s66 = sphi 0, %s50
      %s74 = sphi 0, %s76
      %s77 = sphi 0, %s74
      %s78 = sphi 0, %s77
      %s94 = sphi 0, %s78
      %s102 = sphi 0, %s104
      %s105 = sphi 0, %s102
      %s106 = sphi 0, %s105
      %s122 = sphi 0, %s106
      %s130 = sphi 0, %s132
      %s133 = sphi 0, %s130
      %s134 = sphi 0, %s133
      %s150 = sphi 0, %s134
    $region4: #{tpu_custom_call.1} parent=1 // loop_header_branch
      %25 = sbr.rel (%p23) target = $region8
    $region5: #{tpu_custom_call.1} parent=1 // loop_body
      %s27 = ssub.s32 %s22, 1
      %s28 = ssub.s32 %s22, 2
      %s35 = sadd.s32 1, %s30
      %p36 = scmp.ge.s32.totalorder %s35, 1
      %s37 = scalar_select %p36, 0, %s35
      %s38 = sadd.s32 1, %s29
      %s39 = scalar_select %p36, %s38, %s29
      %p40 = scmp.ge.s32.totalorder %s39, 2
      %s41 = scalar_select %p40, 0, %s39
      %s42 = ssub.s32 %s29, %s41
      %s43 = ssub.s32 %s30, %s37
      %s44 = sor.u32 %s42, %s43
      %p45 = scmp.eq.s32.totalorder %s44, 0
      %s47 = sadd.s32 %s46, 1
      %s48 = scalar_select %p45, %s46, %s47
      %p51 = pneg %p45
      %p52 = scmp.eq.s32.totalorder %s22, 1
      %p53 = por %p51, %p52
      %p54 = scmp.ne.s32.totalorder %s46, %s49
      %p55 = scmp.eq.s32.totalorder %s22, 0
      %p56 = por %p54, %p55
      %p57 = scmp.ne.s32.totalorder %s46, %s49
      %p58 = scmp.eq.s32.totalorder %s27, 1
      %p59 = por %p57, %p58
      %p60 = scmp.ne.s32.totalorder %s49, %s50
      %p61 = scmp.eq.s32.totalorder %s27, 0
      %p62 = por %p60, %p61
      %p63 = scmp.ne.s32.totalorder %s49, %s50
      %p64 = scmp.eq.s32.totalorder %s28, 1
      %p65 = por %p63, %p64
      %p67 = scmp.ne.s32.totalorder %s50, %s66
      %p68 = scmp.eq.s32.totalorder %s28, 0
      %p69 = por %p67, %p68
      %s70 = ssub.s32 %s29, %s41
      %s71 = ssub.s32 %s30, %s37
      %s72 = sor.u32 %s70, %s71
      %p73 = scmp.eq.s32.totalorder %s72, 0
      %s75 = sadd.s32 %s74, 1
      %s76 = scalar_select %p73, %s74, %s75
      %p79 = pneg %p73
      %p80 = scmp.eq.s32.totalorder %s22, 1
      %p81 = por %p79, %p80
      %p82 = scmp.ne.s32.totalorder %s74, %s77
      %p83 = scmp.eq.s32.totalorder %s22, 0
      %p84 = por %p82, %p83
      %p85 = scmp.ne.s32.totalorder %s74, %s77
      %p86 = scmp.eq.s32.totalorder %s27, 1
      %p87 = por %p85, %p86
      %p88 = scmp.ne.s32.totalorder %s77, %s78
      %p89 = scmp.eq.s32.totalorder %s27, 0
      %p90 = por %p88, %p89
      %p91 = scmp.ne.s32.totalorder %s77, %s78
      %p92 = scmp.eq.s32.totalorder %s28, 1
      %p93 = por %p91, %p92
      %p95 = scmp.ne.s32.totalorder %s78, %s94
      %p96 = scmp.eq.s32.totalorder %s28, 0
      %p97 = por %p95, %p96
      %s98 = ssub.s32 %s29, %s41
      %s99 = ssub.s32 %s30, %s37
      %s100 = sor.u32 %s98, %s99
      %p101 = scmp.eq.s32.totalorder %s100, 0
      %s103 = sadd.s32 %s102, 1
      %s104 = scalar_select %p101, %s102, %s103
      %p107 = pneg %p101
      %p108 = scmp.eq.s32.totalorder %s22, 1
      %p109 = por %p107, %p108
      %p110 = scmp.ne.s32.totalorder %s102, %s105
      %p111 = scmp.eq.s32.totalorder %s22, 0
      %p112 = por %p110, %p111
      %p113 = scmp.ne.s32.totalorder %s102, %s105
      %p114 = scmp.eq.s32.totalorder %s27, 1
      %p115 = por %p113, %p114
      %p116 = scmp.ne.s32.totalorder %s105, %s106
      %p117 = scmp.eq.s32.totalorder %s27, 0
      %p118 = por %p116, %p117
      %p119 = scmp.ne.s32.totalorder %s105, %s106
      %p120 = scmp.eq.s32.totalorder %s28, 1
      %p121 = por %p119, %p120
      %p123 = scmp.ne.s32.totalorder %s106, %s122
      %p124 = scmp.eq.s32.totalorder %s28, 0
      %p125 = por %p123, %p124
      %s126 = ssub.s32 %s29, %s41
      %s127 = ssub.s32 %s30, %s37
      %s128 = sor.u32 %s126, %s127
      %p129 = scmp.eq.s32.totalorder %s128, 0
      %s131 = sadd.s32 %s130, 1
      %s132 = scalar_select %p129, %s130, %s131
      %p135 = pneg %p129
      %p136 = scmp.eq.s32.totalorder %s22, 1
      %p137 = por %p135, %p136
      %p138 = scmp.ne.s32.totalorder %s130, %s133
      %p139 = scmp.eq.s32.totalorder %s22, 0
      %p140 = por %p138, %p139
      %p141 = scmp.ne.s32.totalorder %s130, %s133
      %p142 = scmp.eq.s32.totalorder %s27, 1
      %p143 = por %p141, %p142
      %p144 = scmp.ne.s32.totalorder %s133, %s134
      %p145 = scmp.eq.s32.totalorder %s27, 0
      %p146 = por %p144, %p145
      %p147 = scmp.ne.s32.totalorder %s133, %s134
      %p148 = scmp.eq.s32.totalorder %s28, 1
      %p149 = por %p147, %p148
      %p151 = scmp.ne.s32.totalorder %s134, %s150
      %p152 = scmp.eq.s32.totalorder %s28, 0
      %p153 = por %p151, %p152
      %p154 = scmp.le.s32.totalorder 1, %s22
      %p155 = scmp.lt.s32.totalorder %s22, 3
      %p156 = pnand %p154, %p155
      %p157 = pneg %p156
      // Predicated region
      $region9: #{tpu_custom_call.1} parent=5 // pred_check
        _
      $region10: #{tpu_custom_call.1} parent=5 // pred_check_branch
        %159 = sbr.rel (%p156) target = $region12
      $region11: #{tpu_custom_call.1} parent=5 // pred_region
        %s160 = ssub.s32 %s22, 1
      $region12: #{tpu_custom_call.1} parent=5 // pred_fallthru
        _
      %p161 = scmp.lt.s32.totalorder %s22, 2
      // Predicated region
      $region13: #{tpu_custom_call.1} parent=5 // pred_check
        %p162 = pneg %p161
      $region14: #{tpu_custom_call.1} parent=5 // pred_check_branch
        %164 = sbr.rel (%p162) target = $region16
      $region15: #{tpu_custom_call.1} parent=5 // pred_region
        // Predicated region
        $region17: #{tpu_custom_call.1} parent=15 // pred_check
          %p165 = pneg %p56
        $region18: #{tpu_custom_call.1} parent=15 // pred_check_branch
          %167 = sbr.rel (%p165) target = $region20
        $region19: #{tpu_custom_call.1} parent=15 // pred_region
          %s168 = sand.u32 %s46, 1
          %s169 = scalar_lea.sflag [#allocation3], %s168
          %s170 = sand.u32 %s46, 1
          %s171 = smul.addr %s170, 16
          %s172 = scalar_lea.vmem [#allocation2], %s171
          %s174 = ssub.s32 256, 256
          %175 = vsyncadd %s169, %s174
          %s176 = smul.addr %s29, 8
          %s177 = sadd.s32 %s30, %s176
          %s178 = smul.addr %s177, 32
          %s179 = scalar_lea.hbm %s0, %s178
          %s180 = sshll.u32 %s172, 4
          %s181 = int_to_ptr.vmem [resolvable:$true] %s180
          %186 = dma.hbm_to_vmem [thread:$0]  %s179, 256, %s181, %s169, 32, 32, 2
        $region20: #{tpu_custom_call.1} parent=15 // pred_fallthru
          _
        // Predicated region
        $region21: #{tpu_custom_call.1} parent=15 // pred_check
          %p187 = pneg %p84
        $region22: #{tpu_custom_call.1} parent=15 // pred_check_branch
          %189 = sbr.rel (%p187) target = $region24
        $region23: #{tpu_custom_call.1} parent=15 // pred_region
          %s190 = sand.u32 %s74, 1
          %s191 = scalar_lea.sflag [#allocation6], %s190
          %s192 = sand.u32 %s74, 1
          %s193 = smul.addr %s192, 2
          %s194 = scalar_lea.vmem [#allocation5], %s193
          %s196 = ssub.s32 32, 32
          %197 = vsyncadd %s191, %s196
          %s198 = sadd.s32 %s30, %s29
          %s199 = smul.addr %s198, 32
          %s200 = scalar_lea.hbm %s1, %s199
          %s202 = sshll.u32 %s194, 4
          %s203 = int_to_ptr.vmem [resolvable:$true] %s202
          %205 = dma.hbm_to_vmem [thread:$0]  %s200, 32, %s203, %s191
        $region24: #{tpu_custom_call.1} parent=15 // pred_fallthru
          _
      $region16: #{tpu_custom_call.1} parent=5 // pred_fallthru
        _
      %p206 = scmp.le.s32.totalorder 1, %s22
      %p207 = scmp.lt.s32.totalorder %s22, 3
      %p208 = pnand %p206, %p207
      %p209 = pneg %p208
      // Predicated region
      $region25: #{tpu_custom_call.1} parent=5 // pred_check
        _
      $region26: #{tpu_custom_call.1} parent=5 // pred_check_branch
        %211 = sbr.rel (%p208) target = $region28
      $region27: #{tpu_custom_call.1} parent=5 // pred_region
        %s212 = ssub.s32 %s22, 1
        %s213 = sand.u32 %s49, 1
        %s214 = scalar_lea.sflag [#allocation3], %s213
        %s215 = sand.u32 %s49, 1
        %s216 = smul.addr %s215, 16
        %s217 = scalar_lea.vmem [#allocation2], %s216
        // Predicated region
        $region29: #{tpu_custom_call.1} parent=27 // pred_check
          %p218 = pneg %p62
        $region30: #{tpu_custom_call.1} parent=27 // pred_check_branch
          %220 = sbr.rel (%p218) target = $region32
        $region31: #{tpu_custom_call.1} parent=27 // pred_region
          %221 = dma.done %s214, 256
        $region32: #{tpu_custom_call.1} parent=27 // pred_fallthru
          _
        %s222 = sand.u32 %s77, 1
        %s223 = scalar_lea.sflag [#allocation6], %s222
        %s224 = sand.u32 %s77, 1
        %s225 = smul.addr %s224, 2
        %s226 = scalar_lea.vmem [#allocation5], %s225
        // Predicated region
        $region33: #{tpu_custom_call.1} parent=27 // pred_check
          %p227 = pneg %p90
        $region34: #{tpu_custom_call.1} parent=27 // pred_check_branch
          %229 = sbr.rel (%p227) target = $region36
        $region35: #{tpu_custom_call.1} parent=27 // pred_region
          %230 = dma.done %s223, 32
        $region36: #{tpu_custom_call.1} parent=27 // pred_fallthru
          _
        %s231 = sand.u32 %s49, 1
        %s232 = scalar_lea.sflag [#allocation3], %s231
        %s233 = sand.u32 %s49, 1
        %s234 = smul.addr %s233, 16
        %s235 = scalar_lea.vmem [#allocation2], %s234
        %p236 = pneg %p62
        %p237 = pneg %p59
        %s238 = sand.u32 %s77, 1
        %s239 = scalar_lea.sflag [#allocation6], %s238
        %s240 = sand.u32 %s77, 1
        %s241 = smul.addr %s240, 2
        %s242 = scalar_lea.vmem [#allocation5], %s241
        %p243 = pneg %p90
        %p244 = pneg %p87
        %p245 = pneg %p118
        %p246 = pneg %p115
        %s247 = sand.u32 %s105, 1
        %s248 = scalar_lea.sflag [#allocation4], %s247
        %s249 = sand.u32 %s105, 1
        %s250 = smul.addr %s249, 2
        %s251 = scalar_lea.vmem [#allocation7], %s250
        %p252 = pneg %p146
        %p253 = pneg %p143
        %s254 = sand.u32 %s133, 1
        %s255 = scalar_lea.sflag [#allocation9], %s254
        %s256 = sand.u32 %s133, 1
        %s257 = smul.addr %s256, 2
        %s258 = scalar_lea.vmem [#allocation8], %s257
        %v259 = vld [vmem:[%s217] sm:$0x3]
        %v260 = vld [vmem:[%s217 + $0x2] sm:$0x3]
        %v261 = vld [vmem:[%s217 + $0x4] sm:$0x3]
        %v262 = vld [vmem:[%s217 + $0x6] sm:$0x3]
        %v263 = vld [vmem:[%s217 + $0x8] sm:$0x3]
        %v264 = vld [vmem:[%s217 + $0xa] sm:$0x3]
        %v265 = vld [vmem:[%s217 + $0xc] sm:$0x3]
        %v266 = vld [vmem:[%s217 + $0xe] sm:$0x3]
        %v267 = vld [vmem:[%s226] sm:$0x3]
        %vm268 = vcmask 1041408
        %v269 = vsel %vm268, %v259, -inf
        %v270 = vsel %vm268, %v260, -inf
        %v271 = vsel %vm268, %v261, -inf
        %v272 = vsel %vm268, %v262, -inf
        %v273 = vsel %vm268, %v263, -inf
        %v274 = vmax.f32 %v269, %v273
        %v275 = vsel %vm268, %v264, -inf
        %v276 = vmax.f32 %v270, %v275
        %v277 = vsel %vm268, %v265, -inf
        %v278 = vmax.f32 %v271, %v277
        %v279 = vsel %vm268, %v266, -inf
        %v280 = vmax.f32 %v272, %v279
        %v281 = vmax.f32 %v274, %v276
        %v282 = vmax.f32 %v278, %v280
        %v283 = vmax.f32 %v281, %v282
        %v284 = vsub.f32 %v259, %v283
        %v285 = vsub.f32 %v260, %v283
        %v286 = vsub.f32 %v261, %v283
        %v287 = vsub.f32 %v262, %v283
        %v288 = vsub.f32 %v263, %v283
        %v289 = vsub.f32 %v264, %v283
        %v290 = vsub.f32 %v265, %v283
        %v291 = vsub.f32 %v266, %v283
        %v292 = vmul.f32 %v284, 1.442695
        %v293 = vpow.pop %v292
        %v294 = vmul.f32 %v285, 1.442695
        %v295 = vpow.pop %v294
        %v296 = vmul.f32 %v286, 1.442695
        %v297 = vpow.pop %v296
        %v298 = vmul.f32 %v287, 1.442695
        %v299 = vpow.pop %v298
        %v300 = vmul.f32 %v288, 1.442695
        %v301 = vpow.pop %v300
        %v302 = vmul.f32 %v289, 1.442695
        %v303 = vpow.pop %v302
        %v304 = vmul.f32 %v290, 1.442695
        %v305 = vpow.pop %v304
        %v306 = vmul.f32 %v291, 1.442695
        %v307 = vpow.pop %v306
        %v308 = vsel %vm268, %v293, 0.0
        %v309 = vsel %vm268, %v295, 0.0
        %v310 = vadd.f32 %v308, %v309
        %v311 = vsel %vm268, %v297, 0.0
        %v312 = vadd.f32 %v310, %v311
        %v313 = vsel %vm268, %v299, 0.0
        %v314 = vadd.f32 %v312, %v313
        %v315 = vsel %vm268, %v301, 0.0
        %v316 = vadd.f32 %v314, %v315
        %v317 = vsel %vm268, %v303, 0.0
        %v318 = vadd.f32 %v316, %v317
        %v319 = vsel %vm268, %v305, 0.0
        %v320 = vadd.f32 %v318, %v319
        %v321 = vsel %vm268, %v307, 0.0
        %v322 = vadd.f32 %v320, %v321
        %v323 = vlog2.pop %v322
        %v324 = vmul.f32 %v323, 0.6931472
        %vm325 = vcmp.eq.s32.totalorder %v267, 0
        %vm326 = vcmp.eq.s32.totalorder %v267, 1
        %vm327 = vcmp.eq.s32.totalorder %v267, 2
        %vm328 = vcmp.eq.s32.totalorder %v267, 3
        %vm329 = vcmp.eq.s32.totalorder %v267, 4
        %vm330 = vcmp.eq.s32.totalorder %v267, 5
        %vm331 = vcmp.eq.s32.totalorder %v267, 6
        %vm332 = vcmp.eq.s32.totalorder %v267, 7
        %v333 = vsel %vm325, %v284, 0.0
        %v334 = vsel %vm326, %v285, 0.0
        %v335 = vsel %vm327, %v286, 0.0
        %v336 = vsel %vm328, %v287, 0.0
        %v337 = vsel %vm329, %v288, 0.0
        %v338 = vsel %vm330, %v289, 0.0
        %v339 = vsel %vm331, %v290, 0.0
        %v340 = vsel %vm332, %v291, 0.0
        %v341 = vsel %vm268, %v333, 0.0
        %v342 = vsel %vm268, %v334, 0.0
        %v343 = vadd.f32 %v341, %v342
        %v344 = vsel %vm268, %v335, 0.0
        %v345 = vadd.f32 %v343, %v344
        %v346 = vsel %vm268, %v336, 0.0
        %v347 = vadd.f32 %v345, %v346
        %v348 = vsel %vm268, %v337, 0.0
        %v349 = vadd.f32 %v347, %v348
        %v350 = vsel %vm268, %v338, 0.0
        %v351 = vadd.f32 %v349, %v350
        %v352 = vsel %vm268, %v339, 0.0
        %v353 = vadd.f32 %v351, %v352
        %v354 = vsel %vm268, %v340, 0.0
        %v355 = vadd.f32 %v353, %v354
        %v356 = vsub.f32 %v324, %v355
        %vm357 = vcmp.eq.s32.totalorder %v267, 255
        %v358 = vsel %vm357, 0.0, %v356
        %359 = vst [vmem:[%s251] sm:$0x3] %v358
        %vm360 = vcmp.gt.f32.partialorder %v358, 0.35667494
        %v361 = vsel %vm360, %v358, 0.0
        %v362 = vsel %vm268, %v361, 0.0
        %v363 = vrot.slane %v362, 4
        %v364 = vadd.f32 %v362, %v363
        %v365 = vrot.slane %v364, 2
        %v366 = vadd.f32 %v364, %v365
        %v367 = vrot.slane %v366, 1
        %v368 = vadd.f32 %v366, %v367
        %v369 = vsel %vm360, 1, 0
        %v370 = vcvt.s32.f32 %v369
        %v371 = vsel %vm268, %v370, 0.0
        %v372 = vrot.slane %v371, 4
        %v373 = vadd.f32 %v371, %v372
        %v374 = vrot.slane %v373, 2
        %v375 = vadd.f32 %v373, %v374
        %v376 = vrot.slane %v375, 1
        %v377 = vadd.f32 %v375, %v376
        %vm378 = vcmask 1040384
        %v379 = vsel %vm378, %v368, %v377
        %380 = vst [vmem:[%s258] sm:$0x3] %v379
        %s381 = sand.u32 %s105, 1
        %s382 = scalar_lea.sflag [#allocation4], %s381
        %s383 = sand.u32 %s105, 1
        %s384 = smul.addr %s383, 2
        %s385 = scalar_lea.vmem [#allocation7], %s384
        %s386 = sand.u32 %s133, 1
        %s387 = scalar_lea.sflag [#allocation9], %s386
        %s388 = sand.u32 %s133, 1
        %s389 = smul.addr %s388, 2
        %s390 = scalar_lea.vmem [#allocation8], %s389
        // Predicated region
        $region37: #{tpu_custom_call.1} parent=27 // pred_check
          %p391 = pneg %p115
        $region38: #{tpu_custom_call.1} parent=27 // pred_check_branch
          %393 = sbr.rel (%p391) target = $region40
        $region39: #{tpu_custom_call.1} parent=27 // pred_region
          %s395 = ssub.s32 32, 32
          %396 = vsyncadd %s382, %s395
          %s397 = sadd.s32 %s32, %s31
          %s398 = smul.addr %s397, 32
          %s399 = scalar_lea.hbm %s2, %s398
          %s401 = sshll.u32 %s385, 4
          %s402 = int_to_ptr.vmem [resolvable:$true] %s401
          %404 = dma.vmem_to_hbm [thread:$0]  %s402, 32, %s399, %s382
        $region40: #{tpu_custom_call.1} parent=27 // pred_fallthru
          _
        // Predicated region
        $region41: #{tpu_custom_call.1} parent=27 // pred_check
          %p405 = pneg %p143
        $region42: #{tpu_custom_call.1} parent=27 // pred_check_branch
          %407 = sbr.rel (%p405) target = $region44
        $region43: #{tpu_custom_call.1} parent=27 // pred_region
          %s409 = ssub.s32 32, 32
          %410 = vsyncadd %s387, %s409
          %s411 = sadd.s32 %s32, %s31
          %s412 = smul.addr %s411, 32
          %s413 = scalar_lea.hbm %s3, %s412
          %s415 = sshll.u32 %s390, 4
          %s416 = int_to_ptr.vmem [resolvable:$true] %s415
          %418 = dma.vmem_to_hbm [thread:$0]  %s416, 32, %s413, %s387
        $region44: #{tpu_custom_call.1} parent=27 // pred_fallthru
          _
      $region28: #{tpu_custom_call.1} parent=5 // pred_fallthru
        _
      %p419 = scmp.le.s32.totalorder 2, %s22
      // Predicated region
      $region45: #{tpu_custom_call.1} parent=5 // pred_check
        %p420 = pneg %p419
      $region46: #{tpu_custom_call.1} parent=5 // pred_check_branch
        %422 = sbr.rel (%p420) target = $region48
      $region47: #{tpu_custom_call.1} parent=5 // pred_region
        %s423 = ssub.s32 %s22, 2
        // Predicated region
        $region49: #{tpu_custom_call.1} parent=47 // pred_check
          %p424 = pneg %p121
        $region50: #{tpu_custom_call.1} parent=47 // pred_check_branch
          %426 = sbr.rel (%p424) target = $region52
        $region51: #{tpu_custom_call.1} parent=47 // pred_region
          %s427 = sand.u32 %s106, 1
          %s428 = scalar_lea.sflag [#allocation4], %s427
          %s429 = sand.u32 %s106, 1
          %s430 = smul.addr %s429, 2
          %s431 = scalar_lea.vmem [#allocation7], %s430
          %432 = dma.done %s428, 32
        $region52: #{tpu_custom_call.1} parent=47 // pred_fallthru
          _
        // Predicated region
        $region53: #{tpu_custom_call.1} parent=47 // pred_check
          %p433 = pneg %p149
        $region54: #{tpu_custom_call.1} parent=47 // pred_check_branch
          %435 = sbr.rel (%p433) target = $region56
        $region55: #{tpu_custom_call.1} parent=47 // pred_region
          %s436 = sand.u32 %s134, 1
          %s437 = scalar_lea.sflag [#allocation9], %s436
          %s438 = sand.u32 %s134, 1
          %s439 = smul.addr %s438, 2
          %s440 = scalar_lea.vmem [#allocation8], %s439
          %441 = dma.done %s437, 32
        $region56: #{tpu_custom_call.1} parent=47 // pred_fallthru
          _
      $region48: #{tpu_custom_call.1} parent=5 // pred_fallthru
        _
    $region6: #{tpu_custom_call.1} parent=1 // loop_footer
      %s26 = sadd.s32 1, %s22
    $region7: #{tpu_custom_call.1} parent=1 // loop_footer_branch
      %21 = sbr.rel target = $region3
    $region8: #{tpu_custom_call.1} parent=1 // loop_exit
      _
    %442 = vsyncpa [#allocation3], 1
    %s443 = scalar_lea.sflag [#allocation3], 1
    %444 = vsyncpa %s443, 1
    %445 = vsyncpa [#allocation6], 1
    %s446 = scalar_lea.sflag [#allocation6], 1
    %447 = vsyncpa %s446, 1
    %448 = vsyncpa [#allocation4], 1
    %s449 = scalar_lea.sflag [#allocation4], 1
    %450 = vsyncpa %s449, 1
    %451 = vsyncpa [#allocation9], 1
    %s452 = scalar_lea.sflag [#allocation9], 1
    %453 = vsyncpa %s452, 1

</llo_original>
